<compile_context>
chip_gen: v5e
topology: v5e:2x2
jax: 0.10.0
libtpu: 0.0.40
codegen_flags: <defaults>
</compile_context>

<pallas_src>
from typing import NamedTuple, Optional

import jax
import jax.numpy as jnp
from jax.experimental import pallas as pl
from jax.experimental.pallas import tpu as pltpu


def _round_up(x: int, m: int) -> int:
    return ((x + m - 1) // m) * m


# --------------------------------------------------------------------------
# Kernel
# --------------------------------------------------------------------------
def _geglu_kernel(x_ref, w_ref, b_ref, o_ref, acc_ref):
    # grid = (M tiles, N tiles, K tiles); K is the innermost (reduction) axis.
    k = pl.program_id(2)

    @pl.when(k == 0)
    def _():
        acc_ref[...] = jnp.zeros_like(acc_ref)

    # One fused MXU matmul covers both the hidden and gate columns of this
    # output tile: w_ref is (tile_k, 2*tile_n) = [W_hidden_tile | W_gate_tile].
    acc_ref[...] += jnp.dot(x_ref[...], w_ref[...],
                            preferred_element_type=jnp.float32)

    @pl.when(k == pl.num_programs(2) - 1)
    def _():
        tn = o_ref.shape[-1]                     # static: tile_n (multiple of 128)
        p = acc_ref[...] + b_ref[...]            # bias add in f32
        h = p[:, :tn]                            # lane-aligned split
        g = p[:, tn:]
        # Exact (erf) GELU, matching torch.nn.functional.gelu default.
        inv_sqrt2 = jnp.float32(0.7071067811865476)
        gelu_g = 0.5 * g * (1.0 + jax.lax.erf(g * inv_sqrt2))
        o_ref[...] = (h * gelu_g).astype(o_ref.dtype)


# --------------------------------------------------------------------------
# One-time parameter preparation (hoisted out of the per-call path)
# --------------------------------------------------------------------------
class GEGLUParams(NamedTuple):
    w_fused: jax.Array    # (K_pad, n_tiles * 2 * tile_n)
    b_fused: jax.Array    # (1, n_tiles * 2 * tile_n), float32
    dim_in: int
    dim_out: int
    tile_n: int
    tile_k: int


def prepare_geglu_params(weight, bias=None, *, tile_n: Optional[int] = None,
                         tile_k: Optional[int] = None,
                         compute_dtype=None) -> GEGLUParams:
    """Transpose, pad and pack nn.Linear-style GEGLU weights once at init.

    weight: (2*dim_out, dim_in), bias: (2*dim_out,) or None.
    For each output N-tile j, columns [j*2*tn, (j+1)*2*tn) of w_fused hold the
    hidden-half tile followed by the gate-half tile, so the kernel does a
    single contiguous weight DMA + single MXU dot per grid step.
    """
    two_dim_out, dim_in = weight.shape
    dim_out = two_dim_out // 2
    if bias is None:
        bias = jnp.zeros((two_dim_out,), dtype=weight.dtype)

    if tile_n is None:
        tile_n = min(256, _round_up(dim_out, 128))
    if tile_k is None:
        tile_k = min(512, _round_up(dim_in, 128))

    K_pad = _round_up(dim_in, tile_k)
    N_pad = _round_up(dim_out, tile_n)
    n_tiles = N_pad // tile_n

    wh = weight[:dim_out, :].T                           # (dim_in, dim_out)
    wg = weight[dim_out:, :].T
    wh = jnp.pad(wh, ((0, K_pad - dim_in), (0, N_pad - dim_out)))
    wg = jnp.pad(wg, ((0, K_pad - dim_in), (0, N_pad - dim_out)))
    w_fused = jnp.concatenate(
        [wh.reshape(K_pad, n_tiles, tile_n),
         wg.reshape(K_pad, n_tiles, tile_n)],
        axis=-1).reshape(K_pad, n_tiles * 2 * tile_n)
    if compute_dtype is not None:
        w_fused = w_fused.astype(compute_dtype)          # e.g. bf16 for v6e/v7x

    bh = jnp.pad(bias[:dim_out].astype(jnp.float32), (0, N_pad - dim_out))
    bg = jnp.pad(bias[dim_out:].astype(jnp.float32), (0, N_pad - dim_out))
    b_fused = jnp.concatenate(
        [bh.reshape(n_tiles, tile_n), bg.reshape(n_tiles, tile_n)],
        axis=-1).reshape(1, n_tiles * 2 * tile_n)

    return GEGLUParams(w_fused, b_fused, dim_in, dim_out, tile_n, tile_k)


# --------------------------------------------------------------------------
# Forward
# --------------------------------------------------------------------------
def geglu(x, params: GEGLUParams, *, tile_m: Optional[int] = None):
    """GEGLU forward.  x: (..., dim_in) -> (..., dim_out)."""
    *lead, dim_in = x.shape
    assert dim_in == params.dim_in
    M = 1
    for d in lead:
        M *= d
    out_dtype = x.dtype

    tile_n, tile_k = params.tile_n, params.tile_k
    K_pad = params.w_fused.shape[0]
    n_tiles = params.w_fused.shape[1] // (2 * tile_n)
    N_pad = n_tiles * tile_n

    if tile_m is None:
        tile_m = min(512, _round_up(max(M, 1), 8))
    tile_m = _round_up(tile_m, 8)
    M_pad = _round_up(max(M, 1), tile_m)

    x2 = x.reshape(M, dim_in)
    if x2.dtype != params.w_fused.dtype:
        # Keep MXU operands matched (e.g. bf16 weights -> bf16 activations).
        x2 = x2.astype(params.w_fused.dtype)
    if M_pad != M or K_pad != dim_in:
        x2 = jnp.pad(x2, ((0, M_pad - M), (0, K_pad - dim_in)))

    grid = (M_pad // tile_m, n_tiles, K_pad // tile_k)

    # VMEM budget: double-buffered x / w / bias / out tiles + f32 accumulator.
    in_item = jnp.dtype(x2.dtype).itemsize
    out_item = jnp.dtype(out_dtype).itemsize
    tile_bytes = (2 * tile_m * tile_k * in_item
                  + 2 * tile_k * 2 * tile_n * in_item
                  + 2 * 2 * tile_n * 4
                  + 2 * tile_m * tile_n * out_item
                  + tile_m * 2 * tile_n * 4)
    vmem_limit = int(min(max(2 * tile_bytes, 32 * 1024 * 1024),
                         48 * 1024 * 1024))            # headroom on v7x (64 MiB/TC)

    cost = pl.CostEstimate(
        flops=2 * M_pad * K_pad * 2 * N_pad,
        transcendentals=M_pad * N_pad,
        bytes_accessed=(x2.size * in_item
                        + params.w_fused.size * in_item
                        + params.b_fused.size * 4
                        + M_pad * N_pad * out_item),
    )

    out = pl.pallas_call(
        _geglu_kernel,
        out_shape=jax.ShapeDtypeStruct((M_pad, N_pad), out_dtype),
        grid_spec=pltpu.PrefetchScalarGridSpec(
            num_scalar_prefetch=0,
            grid=grid,
            in_specs=[
                pl.BlockSpec((tile_m, tile_k), lambda i, j, k: (i, k)),
                pl.BlockSpec((tile_k, 2 * tile_n), lambda i, j, k: (k, j)),
                pl.BlockSpec((1, 2 * tile_n), lambda i, j, k: (0, j)),
            ],
            out_specs=pl.BlockSpec((tile_m, tile_n), lambda i, j, k: (i, j)),
            scratch_shapes=[pltpu.VMEM((tile_m, 2 * tile_n), jnp.float32)],
        ),
        compiler_params=pltpu.CompilerParams(
            dimension_semantics=("parallel", "parallel", "arbitrary"),
            vmem_limit_bytes=vmem_limit,
        ),
        cost_estimate=cost,
    )(x2, params.w_fused, params.b_fused)

    out = out[:M, :params.dim_out]
    return out.reshape(*lead, params.dim_out)


# --------------------------------------------------------------------------
# Reference + demo
# --------------------------------------------------------------------------
def _reference_geglu(x, weight, bias):
    proj = jnp.dot(x, weight.T) + bias
    dim_out = weight.shape[0] // 2
    h, g = proj[..., :dim_out], proj[..., dim_out:]
    return h * jax.nn.gelu(g, approximate=False)


if __name__ == "__main__":
    key = jax.random.PRNGKey(0)
    k_x, k_w, k_b, k_x2, k_w2, k_b2 = jax.random.split(key, 6)

    # ---- Test 1: module-sized shapes, f32 path, tight tolerance -----------
    batch, seq, dim_in, dim_out = 2, 8, 32, 32
    x = jax.random.normal(k_x, (batch, seq, dim_in), dtype=jnp.float32)
    bound = 1.0 / (dim_in ** 0.5)   # nn.Linear-style U(-1/sqrt(fan_in), ...)
    weight = jax.random.uniform(k_w, (2 * dim_out, dim_in),
                                minval=-bound, maxval=bound, dtype=jnp.float32)
    bias = jax.random.uniform(k_b, (2 * dim_out,),
                              minval=-bound, maxval=bound, dtype=jnp.float32)

    params = prepare_geglu_params(weight, bias)       # hoisted: done once at init
    out = jax.block_until_ready(geglu(x, params))
    ref = _reference_geglu(x, weight, bias)
    assert out.shape == (batch, seq, dim_out)
    assert jnp.allclose(out, ref, atol=1e-5, rtol=1e-5), \
        float(jnp.max(jnp.abs(out - ref)))

    # ---- Test 2: multi-tile (M,N,K) grid, bf16 operands, f32 accum --------
    batch2, seq2, dim_in2, dim_out2 = 2, 64, 256, 256
    x2 = jax.random.normal(k_x2, (batch2, seq2, dim_in2), dtype=jnp.float32)
    bound2 = 1.0 / (dim_in2 ** 0.5)
    weight2 = jax.random.uniform(k_w2, (2 * dim_out2, dim_in2),
                                 minval=-bound2, maxval=bound2, dtype=jnp.float32)
    bias2 = jax.random.uniform(k_b2, (2 * dim_out2,),
                               minval=-bound2, maxval=bound2, dtype=jnp.float32)

    params2 = prepare_geglu_params(weight2, bias2, tile_n=128, tile_k=128,
                                   compute_dtype=jnp.bfloat16)
    out2 = jax.block_until_ready(geglu(x2, params2, tile_m=64))  # grid = (2, 2, 2)
    ref2 = _reference_geglu(x2, weight2, bias2)
    assert out2.shape == (batch2, seq2, dim_out2)
    assert jnp.allclose(out2.astype(jnp.float32), ref2, atol=3e-2, rtol=3e-2), \
        float(jnp.max(jnp.abs(out2.astype(jnp.float32) - ref2)))

    print("KERNEL_OK")
</pallas_src>

<mosaic_0001>
module attributes {stable_mosaic.version = 11 : i64} {
  func.func @_geglu_kernel(%arg0: i32, %arg1: i32, %arg2: i32, %arg3: memref<16x128xf32, #tpu.memory_space<vmem>>, %arg4: memref<128x256xf32, #tpu.memory_space<vmem>>, %arg5: memref<1x256xf32, #tpu.memory_space<vmem>>, %arg6: memref<16x128xf32, #tpu.memory_space<vmem>>, %arg7: memref<16x256xf32, #tpu.memory_space<vmem>>) attributes {dimension_semantics = [#tpu.dimension_semantics<parallel>, #tpu.dimension_semantics<parallel>, #tpu.dimension_semantics<arbitrary>], iteration_bounds = array<i64: 1, 1, 1>, scalar_prefetch = 0 : i64, scratch_operands = 1 : i64, tpu.core_type = #tpu.core_type<tc>, window_params = [{transform_indices = @transform_0, window_bounds = array<i64: 16, 128>}, {transform_indices = @transform_1, window_bounds = array<i64: 128, 256>}, {transform_indices = @transform_2, window_bounds = array<i64: 1, 256>}, {transform_indices = @transform_3, window_bounds = array<i64: 16, 128>}]} {
    %c0_i32 = arith.constant 0 : i32
    %0 = arith.cmpi eq, %arg2, %c0_i32 : i32
    %1 = arith.extui %0 : i1 to i32
    %c0_i32_0 = arith.constant 0 : i32
    %2 = arith.cmpi ne, %1, %c0_i32_0 : i32
    scf.if %2 {
      %cst_10 = arith.constant 0.000000e+00 : f32
      %12 = vector.broadcast %cst_10 : f32 to vector<16x256xf32>
      %c0_11 = arith.constant 0 : index
      %c0_12 = arith.constant 0 : index
      %13 = vector.load %arg7[%c0_11, %c0_12] : memref<16x256xf32, #tpu.memory_space<vmem>>, vector<16x256xf32>
      tpu.vector_store %arg7[%c0_11, %c0_12], %12 {strides = array<i32>} : memref<16x256xf32, #tpu.memory_space<vmem>>, vector<16x256xf32>,
    } else {
    }
    %c0 = arith.constant 0 : index
    %c0_1 = arith.constant 0 : index
    %3 = vector.load %arg7[%c0, %c0_1] : memref<16x256xf32, #tpu.memory_space<vmem>>, vector<16x256xf32>
    %c0_2 = arith.constant 0 : index
    %c0_3 = arith.constant 0 : index
    %4 = vector.load %arg3[%c0_2, %c0_3] : memref<16x128xf32, #tpu.memory_space<vmem>>, vector<16x128xf32>
    %c0_4 = arith.constant 0 : index
    %c0_5 = arith.constant 0 : index
    %5 = vector.load %arg4[%c0_4, %c0_5] : memref<128x256xf32, #tpu.memory_space<vmem>>, vector<128x256xf32>
    %cst = arith.constant dense<0.000000e+00> : vector<16x256xf32>
    %6 = tpu.matmul %4, %5, %cst {dimension_numbers = #tpu.dot_dimension_numbers<[1], [0], [0], [1], [0, 0, 1, 1], [], []>} : vector<16x128xf32>, vector<128x256xf32>, vector<16x256xf32> -> vector<16x256xf32>
    %7 = arith.addf %3, %6 : vector<16x256xf32>
    %c0_6 = arith.constant 0 : index
    %c0_7 = arith.constant 0 : index
    %8 = vector.load %arg7[%c0_6, %c0_7] : memref<16x256xf32, #tpu.memory_space<vmem>>, vector<16x256xf32>
    tpu.vector_store %arg7[%c0_6, %c0_7], %7 {strides = array<i32>} : memref<16x256xf32, #tpu.memory_space<vmem>>, vector<16x256xf32>,
    %c0_i32_8 = arith.constant 0 : i32
    %9 = arith.cmpi eq, %arg2, %c0_i32_8 : i32
    %10 = arith.extui %9 : i1 to i32
    %c0_i32_9 = arith.constant 0 : i32
    %11 = arith.cmpi ne, %10, %c0_i32_9 : i32
    scf.if %11 {
      %c0_10 = arith.constant 0 : index
      %c0_11 = arith.constant 0 : index
      %12 = vector.load %arg7[%c0_10, %c0_11] : memref<16x256xf32, #tpu.memory_space<vmem>>, vector<16x256xf32>
      %c0_12 = arith.constant 0 : index
      %c0_13 = arith.constant 0 : index
      %13 = vector.load %arg5[%c0_12, %c0_13] : memref<1x256xf32, #tpu.memory_space<vmem>>, vector<1x256xf32>
      %14 = vector.broadcast %13 : vector<1x256xf32> to vector<16x256xf32>
      %15 = arith.addf %12, %14 : vector<16x256xf32>
      %16 = vector.extract_strided_slice %15 {offsets = [0, 0], sizes = [16, 128], strides = [1, 1]} : vector<16x256xf32> to vector<16x128xf32>
      %17 = vector.extract_strided_slice %15 {offsets = [0, 128], sizes = [16, 128], strides = [1, 1]} : vector<16x256xf32> to vector<16x128xf32>
      %cst_14 = arith.constant 5.000000e-01 : f32
      %18 = vector.broadcast %cst_14 : f32 to vector<16x128xf32>
      %19 = arith.mulf %18, %17 : vector<16x128xf32>
      %cst_15 = arith.constant 0.707106769 : f32
      %20 = vector.broadcast %cst_15 : f32 to vector<16x128xf32>
      %21 = arith.mulf %17, %20 : vector<16x128xf32>
      %22 = math.erf %21 : vector<16x128xf32>
      %cst_16 = arith.constant 1.000000e+00 : f32
      %23 = vector.broadcast %cst_16 : f32 to vector<16x128xf32>
      %24 = arith.addf %23, %22 : vector<16x128xf32>
      %25 = arith.mulf %19, %24 : vector<16x128xf32>
      %26 = arith.mulf %16, %25 : vector<16x128xf32>
      %c0_17 = arith.constant 0 : index
      %c0_18 = arith.constant 0 : index
      %27 = vector.load %arg6[%c0_17, %c0_18] : memref<16x128xf32, #tpu.memory_space<vmem>>, vector<16x128xf32>
      tpu.vector_store %arg6[%c0_17, %c0_18], %26 {strides = array<i32>} : memref<16x128xf32, #tpu.memory_space<vmem>>, vector<16x128xf32>,
    } else {
    }
    return
  }
  func.func @transform_0(%arg0: i32, %arg1: i32, %arg2: i32) -> (i32, i32) {
    %c0_i32 = arith.constant 0 : i32
    return %arg0, %arg2 : i32, i32
  }
  func.func @transform_1(%arg0: i32, %arg1: i32, %arg2: i32) -> (i32, i32) {
    %c0_i32 = arith.constant 0 : i32
    return %arg2, %arg1 : i32, i32
  }
  func.func @transform_2(%arg0: i32, %arg1: i32, %arg2: i32) -> (i32, i32) {
    %c0_i32 = arith.constant 0 : i32
    %c0_i32_0 = arith.constant 0 : i32
    return %c0_i32, %arg1 : i32, i32
  }
  func.func @transform_3(%arg0: i32, %arg1: i32, %arg2: i32) -> (i32, i32) {
    %c0_i32 = arith.constant 0 : i32
    return %arg0, %arg1 : i32, i32
  }
}

</mosaic_0001>

<llo_original>
// kernel: tpu_custom_call.1
$region0: #{tpu_custom_call.1}
  #allocation0 [shape = 'u32[]', space=smem, size = 0x4, offset = 0x4, fixed_abs, tag = 'smem constant byte address 0x4 - core index']
  #allocation1 [shape = 'u32[72,128]{1,0:T(1,128)}', space=vmem, size = 0x9000, scoped, tag = 'internal scratch']
  #allocation2 [shape = 'f32[16,256]{1,0:T(8,128)}', space=vmem, size = 0x4000, scoped, tag = 'scratch operand']
  %s0 = inlined_call_operand.hbm [shape: f32[16,128], index: 0, kind: input, shape index: {}]
  %s1 = inlined_call_operand.hbm [shape: f32[128,256], index: 1, kind: input, shape index: {}]
  %s2 = inlined_call_operand.hbm [shape: f32[1,256], index: 2, kind: input, shape index: {}]
  %s3 = inlined_call_operand.hbm [shape: f32[16,128], index: 3, kind: output, shape index: {}]
  %s4 = sld [smem:[#allocation0]]
  $region42: #{tpu_custom_call.1} parent=0
    _
  %s6 = ssub.s32 1, %s4
  %s7 = scalar_select 0, %s6, %s4
  $region1: #{tpu_custom_call.1} parent=0
    #allocation3 [shape = 'u8[8192]{0}', space=vmem, size = 0x2000, scoped, tag = 'input window, operand 0, single buffered']
    #allocation4 [shape = 's32[1]{0}', space=sflag, size = 0x4, scoped, tag = 'scoped memory for tpu_custom_call.1']
    #allocation5 [shape = 's32[1]{0}', space=sflag, size = 0x4, scoped, tag = 'scoped memory for tpu_custom_call.1']
    #allocation6 [shape = 'u8[131072]{0}', space=vmem, size = 0x20000, scoped, tag = 'input window, operand 1, single buffered']
    #allocation7 [shape = 's32[1]{0}', space=sflag, size = 0x4, scoped, tag = 'scoped memory for tpu_custom_call.1']
    #allocation8 [shape = 'u8[1024]{0}', space=vmem, size = 0x400, scoped, tag = 'input window, operand 2, single buffered']
    #allocation9 [shape = 'u8[8192]{0}', space=vmem, size = 0x2000, scoped, tag = 'output window, operand 0, single buffered']
    %8 = vsyncpa [#allocation4], 0
    %9 = vsyncpa [#allocation7], 0
    %10 = vsyncpa [#allocation5], 0
    // Predicated region
    $region2: #{tpu_custom_call.1} parent=1 // pred_check
      _
    $region3: #{tpu_custom_call.1} parent=1 // pred_check_branch
      %12 = sbr.rel (0) target = $region5
    $region4: #{tpu_custom_call.1} parent=1 // pred_region
      %14 = vsyncadd [#allocation4], 0
      %s15 = sshll.u32 %s0, 4
      %s16 = int_to_ptr.hbm [resolvable:$true] %s15
      %s17 = sshll.u32 [#allocation3], 4
      %s18 = int_to_ptr.vmem [resolvable:$true] %s17
      %23 = dma.hbm_to_vmem [thread:$0]  %s16, 256, %s18, [#allocation4], 128, 128, 8
    $region5: #{tpu_custom_call.1} parent=1 // pred_fallthru
      _
    // Predicated region
    $region6: #{tpu_custom_call.1} parent=1 // pred_check
      _
    $region7: #{tpu_custom_call.1} parent=1 // pred_check_branch
      %25 = sbr.rel (0) target = $region9
    $region8: #{tpu_custom_call.1} parent=1 // pred_region
      %27 = vsyncadd [#allocation7], 0
      %s28 = sshll.u32 %s1, 4
      %s29 = int_to_ptr.hbm [resolvable:$true] %s28
      %s30 = sshll.u32 [#allocation6], 4
      %s31 = int_to_ptr.vmem [resolvable:$true] %s30
      %36 = dma.hbm_to_vmem [thread:$0]  %s29, 4096, %s31, [#allocation7], 256, 256, 16
    $region9: #{tpu_custom_call.1} parent=1 // pred_fallthru
      _
    // Predicated region
    $region10: #{tpu_custom_call.1} parent=1 // pred_check
      _
    $region11: #{tpu_custom_call.1} parent=1 // pred_check_branch
      %38 = sbr.rel (0) target = $region13
    $region12: #{tpu_custom_call.1} parent=1 // pred_region
      %40 = vsyncadd [#allocation7], 0
      %s42 = sshll.u32 %s2, 4
      %s43 = int_to_ptr.hbm [resolvable:$true] %s42
      %s44 = sshll.u32 [#allocation8], 4
      %s45 = int_to_ptr.vmem [resolvable:$true] %s44
      %47 = dma.hbm_to_vmem [thread:$0]  %s43, 32, %s45, [#allocation7]
    $region13: #{tpu_custom_call.1} parent=1 // pred_fallthru
      _
    // Predicated region
    $region14: #{tpu_custom_call.1} parent=1 // pred_check
      _
    $region15: #{tpu_custom_call.1} parent=1 // pred_check_branch
      %49 = sbr.rel (0) target = $region17
    $region16: #{tpu_custom_call.1} parent=1 // pred_region
      %51 = dma.done [#allocation4], 256
    $region17: #{tpu_custom_call.1} parent=1 // pred_fallthru
      _
    // Predicated region
    $region18: #{tpu_custom_call.1} parent=1 // pred_check
      _
    $region19: #{tpu_custom_call.1} parent=1 // pred_check_branch
      %53 = sbr.rel (0) target = $region21
    $region20: #{tpu_custom_call.1} parent=1 // pred_region
      %55 = dma.done [#allocation7], 4096
    $region21: #{tpu_custom_call.1} parent=1 // pred_fallthru
      _
    // Predicated region
    $region22: #{tpu_custom_call.1} parent=1 // pred_check
      _
    $region23: #{tpu_custom_call.1} parent=1 // pred_check_branch
      %57 = sbr.rel (0) target = $region25
    $region24: #{tpu_custom_call.1} parent=1 // pred_region
      %59 = dma.done [#allocation7], 32
    $region25: #{tpu_custom_call.1} parent=1 // pred_fallthru
      _
    %p60 = scmp.eq.s32.totalorder 0, 0
    // Predicated region
    $region26: #{tpu_custom_call.1} parent=1 // pred_check
      %p61 = pneg %p60
    $region27: #{tpu_custom_call.1} parent=1 // pred_check_branch
      %63 = sbr.rel (%p61) target = $region29
    $region28: #{tpu_custom_call.1} parent=1 // pred_region
      %64 = vst [vmem:[#allocation2] sm:$0xff] 0.0
      %65 = vst [vmem:[#allocation2 + $0x8] sm:$0xff] 0.0
      %66 = vst [vmem:[#allocation2 + $0x10] sm:$0xff] 0.0
      %67 = vst [vmem:[#allocation2 + $0x18] sm:$0xff] 0.0
    $region29: #{tpu_custom_call.1} parent=1 // pred_fallthru
      _
    %v68 = vld [vmem:[#allocation2] sm:$0xff]
    %v69 = vld [vmem:[#allocation2 + $0x8] sm:$0xff]
    %v70 = vld [vmem:[#allocation2 + $0x10] sm:$0xff]
    %v71 = vld [vmem:[#allocation2 + $0x18] sm:$0xff]
    %v72 = vld [vmem:[#allocation3] sm:$0xff]
    %v73 = vld [vmem:[#allocation3 + $0x8] sm:$0xff]
    %v74 = vld [vmem:[#allocation6] sm:$0xff]
    %v75 = vld [vmem:[#allocation6 + $0x8] sm:$0xff]
    %v76 = vld [vmem:[#allocation6 + $0x10] sm:$0xff]
    %v77 = vld [vmem:[#allocation6 + $0x18] sm:$0xff]
    %v78 = vld [vmem:[#allocation6 + $0x20] sm:$0xff]
    %v79 = vld [vmem:[#allocation6 + $0x28] sm:$0xff]
    %v80 = vld [vmem:[#allocation6 + $0x30] sm:$0xff]
    %v81 = vld [vmem:[#allocation6 + $0x38] sm:$0xff]
    %v82 = vld [vmem:[#allocation6 + $0x40] sm:$0xff]
    %v83 = vld [vmem:[#allocation6 + $0x48] sm:$0xff]
    %v84 = vld [vmem:[#allocation6 + $0x50] sm:$0xff]
    %v85 = vld [vmem:[#allocation6 + $0x58] sm:$0xff]
    %v86 = vld [vmem:[#allocation6 + $0x60] sm:$0xff]
    %v87 = vld [vmem:[#allocation6 + $0x68] sm:$0xff]
    %v88 = vld [vmem:[#allocation6 + $0x70] sm:$0xff]
    %v89 = vld [vmem:[#allocation6 + $0x78] sm:$0xff]
    %v90 = vld [vmem:[#allocation6 + $0x80] sm:$0xff]
    %v91 = vld [vmem:[#allocation6 + $0x88] sm:$0xff]
    %v92 = vld [vmem:[#allocation6 + $0x90] sm:$0xff]
    %v93 = vld [vmem:[#allocation6 + $0x98] sm:$0xff]
    %v94 = vld [vmem:[#allocation6 + $0xa0] sm:$0xff]
    %v95 = vld [vmem:[#allocation6 + $0xa8] sm:$0xff]
    %v96 = vld [vmem:[#allocation6 + $0xb0] sm:$0xff]
    %v97 = vld [vmem:[#allocation6 + $0xb8] sm:$0xff]
    %v98 = vld [vmem:[#allocation6 + $0xc0] sm:$0xff]
    %v99 = vld [vmem:[#allocation6 + $0xc8] sm:$0xff]
    %v100 = vld [vmem:[#allocation6 + $0xd0] sm:$0xff]
    %v101 = vld [vmem:[#allocation6 + $0xd8] sm:$0xff]
    %v102 = vld [vmem:[#allocation6 + $0xe0] sm:$0xff]
    %v103 = vld [vmem:[#allocation6 + $0xe8] sm:$0xff]
    %v104 = vld [vmem:[#allocation6 + $0xf0] sm:$0xff]
    %v105 = vld [vmem:[#allocation6 + $0xf8] sm:$0xff]
    %106 = vmatpush.msra.mxu0 %v104
    %107 = vmatpush.msra.mxu0 %v102
    %108 = vmatpush.msra.mxu0 %v100
    %109 = vmatpush.msra.mxu0 %v98
    %110 = vmatpush.msra.mxu0 %v96
    %111 = vmatpush.msra.mxu0 %v94
    %112 = vmatpush.msra.mxu0 %v92
    %113 = vmatpush.msra.mxu0 %v90
    %114 = vmatpush.msra.mxu0 %v88
    %115 = vmatpush.msra.mxu0 %v86
    %116 = vmatpush.msra.mxu0 %v84
    %117 = vmatpush.msra.mxu0 %v82
    %118 = vmatpush.msra.mxu0 %v80
    %119 = vmatpush.msra.mxu0 %v78
    %120 = vmatpush.msra.mxu0 %v76
    %121 = vmatpush.msra.mxu0 %v74
    %122 = vmatmul.f32.gmra.mxu0 %v72
    %v123 = vpop.f32.mrf.mxu0
    %v124 = vadd.f32 0.0, %v123
    %125 = vmatmul.f32.gmra.mxu0 %v73
    %v126 = vpop.f32.mrf.mxu0
    %v127 = vadd.f32 0.0, %v126
    %128 = vdwg.mxu0
    %129 = vmatpush.msra.mxu0 %v105
    %130 = vmatpush.msra.mxu0 %v103
    %131 = vmatpush.msra.mxu0 %v101
    %132 = vmatpush.msra.mxu0 %v99
    %133 = vmatpush.msra.mxu0 %v97
    %134 = vmatpush.msra.mxu0 %v95
    %135 = vmatpush.msra.mxu0 %v93
    %136 = vmatpush.msra.mxu0 %v91
    %137 = vmatpush.msra.mxu0 %v89
    %138 = vmatpush.msra.mxu0 %v87
    %139 = vmatpush.msra.mxu0 %v85
    %140 = vmatpush.msra.mxu0 %v83
    %141 = vmatpush.msra.mxu0 %v81
    %142 = vmatpush.msra.mxu0 %v79
    %143 = vmatpush.msra.mxu0 %v77
    %144 = vmatpush.msra.mxu0 %v75
    %145 = vmatmul.f32.gmra.mxu0 %v72
    %v146 = vpop.f32.mrf.mxu0
    %v147 = vadd.f32 0.0, %v146
    %148 = vmatmul.f32.gmra.mxu0 %v73
    %v149 = vpop.f32.mrf.mxu0
    %v150 = vadd.f32 0.0, %v149
    %151 = vdwg.mxu0
    %v152 = vadd.f32 %v68, %v124
    %v153 = vadd.f32 %v69, %v147
    %v154 = vadd.f32 %v70, %v127
    %v155 = vadd.f32 %v71, %v150
    %156 = vst [vmem:[#allocation2] sm:$0xff] %v152
    %157 = vst [vmem:[#allocation2 + $0x8] sm:$0xff] %v153
    %158 = vst [vmem:[#allocation2 + $0x10] sm:$0xff] %v154
    %159 = vst [vmem:[#allocation2 + $0x18] sm:$0xff] %v155
    // Predicated region
    $region30: #{tpu_custom_call.1} parent=1 // pred_check
      %p160 = pneg %p60
    $region31: #{tpu_custom_call.1} parent=1 // pred_check_branch
      %162 = sbr.rel (%p160) target = $region33
    $region32: #{tpu_custom_call.1} parent=1 // pred_region
      %v163 = vld [vmem:[#allocation2] sm:$0xff]
      %v164 = vld [vmem:[#allocation2 + $0x8] sm:$0xff]
      %v165 = vld [vmem:[#allocation2 + $0x10] sm:$0xff]
      %v166 = vld [vmem:[#allocation2 + $0x18] sm:$0xff]
      %v167 = vld [vmem:[#allocation8] sm:$0x3]
      %v169 = vperm.slane %v167, 0
      %v170 = vperm.slane %v167, 1
      %v173 = vadd.f32 %v163, %v169
      %v174 = vadd.f32 %v164, %v170
      %v175 = vadd.f32 %v165, %v169
      %v176 = vadd.f32 %v166, %v170
      %v177 = vmul.f32 %v174, 0.5
      %v178 = vmul.f32 %v176, 0.5
      %v179 = vmul.f32 %v174, 0.70710677
      %v180 = vmul.f32 %v176, 0.70710677
      %v181 = vmul.f32 %v179, %v179
      %v182 = vmin.f32 16.0, %v181
      %v183 = vmul.f32 %v182, 2.1237322e-06
      %v184 = vadd.f32 %v183, 0.00028619796
      %v185 = vmul.f32 %v182, %v184
      %v186 = vadd.f32 %v185, 0.0036580483
      %v187 = vmul.f32 %v182, %v186
      %v188 = vadd.f32 %v187, 0.05243302
      %v189 = vmul.f32 %v182, %v188
      %v190 = vadd.f32 %v189, 0.18741608
      %v191 = vmul.f32 %v182, %v190
      %v192 = vadd.f32 %v191, 1.1283791
      %v193 = vmul.f32 %v179, %v192
      %v194 = vmul.f32 %v182, 3.8918573e-05
      %v195 = vadd.f32 %v194, 0.001143296
      %v196 = vmul.f32 %v182, %v195
      %v197 = vadd.f32 %v196, 0.014752088
      %v198 = vmul.f32 %v182, %v197
      %v199 = vadd.f32 %v198, 0.112945676
      %v200 = vmul.f32 %v182, %v199
      %v201 = vadd.f32 %v200, 0.4994258
      %v202 = vmul.f32 %v182, %v201
      %v203 = vadd.f32 %v202, 1.0
      %v204 = vrcp.pop %v203
      %v205 = vmul.f32 %v203, %v204
      %v206 = vsub.f32 1.0, %v205
      %v207 = vmul.f32 %v204, %v206
      %v208 = vadd.f32 %v204, %v207
      %vm209 = vweird.f32 %v203
      %vm210 = vweird.f32 %v204
      %vm211 = vmor %vm209, %vm210
      %v212 = vsel %vm211, %v204, %v208
      %v213 = vand.u32 2147483647, %v203
      %vm214 = vcmp.eq.f32.partialorder %v213, 8.507059e+37
      %v215 = vand.u32 %v203, 2147483648
      %v216 = vor.u32 1.1754944e-38, %v215
      %v217 = vsel %vm214, %v216, %v212
      %v218 = vmul.f32 %v193, %v217
      %v219 = vmin.f32 %v218, 1.0
      %v220 = vmax.f32 %v219, -1.0
      %v221 = vmul.f32 %v180, %v180
      %v222 = vmin.f32 16.0, %v221
      %v223 = vmul.f32 %v222, 2.1237322e-06
      %v224 = vadd.f32 %v223, 0.00028619796
      %v225 = vmul.f32 %v222, %v224
      %v226 = vadd.f32 %v225, 0.0036580483
      %v227 = vmul.f32 %v222, %v226
      %v228 = vadd.f32 %v227, 0.05243302
      %v229 = vmul.f32 %v222, %v228
      %v230 = vadd.f32 %v229, 0.18741608
      %v231 = vmul.f32 %v222, %v230
      %v232 = vadd.f32 %v231, 1.1283791
      %v233 = vmul.f32 %v180, %v232
      %v234 = vmul.f32 %v222, 3.8918573e-05
      %v235 = vadd.f32 %v234, 0.001143296
      %v236 = vmul.f32 %v222, %v235
      %v237 = vadd.f32 %v236, 0.014752088
      %v238 = vmul.f32 %v222, %v237
      %v239 = vadd.f32 %v238, 0.112945676
      %v240 = vmul.f32 %v222, %v239
      %v241 = vadd.f32 %v240, 0.4994258
      %v242 = vmul.f32 %v222, %v241
      %v243 = vadd.f32 %v242, 1.0
      %v244 = vrcp.pop %v243
      %v245 = vmul.f32 %v243, %v244
      %v246 = vsub.f32 1.0, %v245
      %v247 = vmul.f32 %v244, %v246
      %v248 = vadd.f32 %v244, %v247
      %vm249 = vweird.f32 %v243
      %vm250 = vweird.f32 %v244
      %vm251 = vmor %vm249, %vm250
      %v252 = vsel %vm251, %v244, %v248
      %v253 = vand.u32 2147483647, %v243
      %vm254 = vcmp.eq.f32.partialorder %v253, 8.507059e+37
      %v255 = vand.u32 %v243, 2147483648
      %v256 = vor.u32 1.1754944e-38, %v255
      %v257 = vsel %vm254, %v256, %v252
      %v258 = vmul.f32 %v233, %v257
      %v259 = vmin.f32 %v258, 1.0
      %v260 = vmax.f32 %v259, -1.0
      %v261 = vadd.f32 %v220, 1.0
      %v262 = vadd.f32 %v260, 1.0
      %v263 = vmul.f32 %v177, %v261
      %v264 = vmul.f32 %v178, %v262
      %v265 = vmul.f32 %v173, %v263
      %v266 = vmul.f32 %v175, %v264
      %267 = vst [vmem:[#allocation9] sm:$0xff] %v265
      %268 = vst [vmem:[#allocation9 + $0x8] sm:$0xff] %v266
    $region33: #{tpu_custom_call.1} parent=1 // pred_fallthru
      _
    // Predicated region
    $region34: #{tpu_custom_call.1} parent=1 // pred_check
      _
    $region35: #{tpu_custom_call.1} parent=1 // pred_check_branch
      %270 = sbr.rel (0) target = $region37
    $region36: #{tpu_custom_call.1} parent=1 // pred_region
      %272 = vsyncadd [#allocation5], 0
      %s273 = sshll.u32 [#allocation9], 4
      %s274 = int_to_ptr.vmem [resolvable:$true] %s273
      %s275 = sshll.u32 %s3, 4
      %s276 = int_to_ptr.hbm [resolvable:$true] %s275
      %281 = dma.vmem_to_hbm [thread:$0]  %s274, 256, %s276, [#allocation5], 128, 128, 8
    $region37: #{tpu_custom_call.1} parent=1 // pred_fallthru
      _
    // Predicated region
    $region38: #{tpu_custom_call.1} parent=1 // pred_check
      _
    $region39: #{tpu_custom_call.1} parent=1 // pred_check_branch
      %283 = sbr.rel (0) target = $region41
    $region40: #{tpu_custom_call.1} parent=1 // pred_region
      %285 = dma.done [#allocation5], 256
    $region41: #{tpu_custom_call.1} parent=1 // pred_fallthru
      _
    %286 = vsyncpa [#allocation4], 1
    %287 = vsyncpa [#allocation7], 1
    %288 = vsyncpa [#allocation5], 1

</llo_original>
